<compile_context>
chip_gen: v5e
topology: v5e:2x2
jax: 0.10.0
libtpu: 0.0.40
codegen_flags: <defaults>
</compile_context>

<pallas_src>
import functools

import jax
import jax.numpy as jnp
from jax import lax
from jax.experimental import pallas as pl
from jax.experimental.pallas import tpu as pltpu


KH, KW = 3, 3
STRIDE_H, STRIDE_W = 10, 1
PAD_H, PAD_W = 1, 1


def _out_dim(size, k, s, p):
    return (size + 2 * p - k) // s + 1


def _fused_convnet_kernel(w_ref, x_ref, o_ref, scr_ref, *, n, w):
    """Three fused conv(3x3, stride (10,1), pad (1,1), no bias) + ReLU layers.

    Layout: one "row" of a layer is the (N*W,) vector of all batch images' pixels
    for that output row, living on the lane axis; H lives on sublanes (input ref) or
    in tiny Python-unrolled loops (outputs: OH <= 2 because of the H-stride of 10).

    w_ref   : SMEM (27,) f32  -- w1,w2,w3 flattened as layer*9 + kh*3 + kw.
    x_ref   : VMEM (H, N*W+2) -- input, live data at lane offset 1 so the three kw
                                 taps are static-offset loads (offsets 0/1/2).
    o_ref   : VMEM (OH3, N*W) -- final output, lane offset 0.
    scr_ref : VMEM (rows, N*W+2) f32 scratch reused by layer-1 and layer-2
              activations.  Never zero-filled: the pad/garbage lanes at the edges
              are only ever read under a mask.
    """
    nw = n * w
    h0 = x_ref.shape[0]

    # Static per-layer heights.
    h1 = _out_dim(h0, KH, STRIDE_H, PAD_H)
    h2 = _out_dim(h1, KH, STRIDE_H, PAD_H)
    h3 = _out_dim(h2, KH, STRIDE_H, PAD_H)

    # Hoisted lane masks: per-image column index; kw=0 tap is invalid at col 0,
    # kw=2 tap is invalid at col W-1 (these also kill cross-image contamination
    # and any unwritten scratch lanes).  kw=1 needs no mask.
    col = lax.broadcasted_iota(jnp.int32, (1, nw), 1) % w
    masks = (col != 0, None, col != (w - 1))

    def conv_relu_rows(load_tap, h_in, h_out, layer):
        # Memoized scalar->vector weight broadcasts: each used (kh,kw) weight is
        # broadcast exactly once per layer (hoisted out of the oh / tap loops).
        wb = {}

        def wvec(kh, kw):
            if (kh, kw) not in wb:
                wb[(kh, kw)] = jnp.full(
                    (1, nw), w_ref[layer * 9 + kh * 3 + kw], jnp.float32)
            return wb[(kh, kw)]

        rows = []
        # NOTE: h_out <= 2 here; switch to lax.fori_loop(..., unroll=True) if H ever
        # grows enough that this unroll bloats register pressure.
        for oh in range(h_out):
            acc = jnp.zeros((1, nw), jnp.float32)
            for kh in range(KH):
                ih = oh * STRIDE_H - PAD_H + kh
                if not (0 <= ih < h_in):
                    continue                       # H zero-padding: skip statically.
                for kw in range(KW):
                    tap = load_tap(ih, kw)         # (1, nw): value of in[ow-1+kw]
                    if masks[kw] is not None:
                        tap = jnp.where(masks[kw], tap, 0.0)
                    acc = acc + wvec(kh, kw) * tap
            rows.append(jnp.maximum(acc, 0.0))     # ReLU
        return rows

    def x_tap(ih, kw):
        return x_ref[ih:ih + 1, kw:kw + nw]

    def scr_tap(ih, kw):
        return scr_ref[ih:ih + 1, kw:kw + nw]

    # Layer 1: x -> scratch rows [0, h1)   (live data stored at lane offset 1).
    for oh, row in enumerate(conv_relu_rows(x_tap, h0, h1, 0)):
        scr_ref[oh:oh + 1, 1:1 + nw] = row
    # Layer 2: scratch -> scratch rows [0, h2)  (all reads traced before the writes).
    for oh, row in enumerate(conv_relu_rows(scr_tap, h1, h2, 1)):
        scr_ref[oh:oh + 1, 1:1 + nw] = row
    # Layer 3: scratch -> output (unpadded, lane offset 0).
    for oh, row in enumerate(conv_relu_rows(scr_tap, h2, h3, 2)):
        o_ref[oh:oh + 1, :] = row


def convnet_forward(x_nchw, w1, w2, w3):
    """Equivalent of ConvNet.forward.  x_nchw: (N,1,H,W) f32 -> (N,1,OH3,W)."""
    n, c, h, wd = x_nchw.shape
    assert c == 1, "ConvNet uses a single channel"
    nw = n * wd

    h1 = _out_dim(h, KH, STRIDE_H, PAD_H)
    h2 = _out_dim(h1, KH, STRIDE_H, PAD_H)
    h3 = _out_dim(h2, KH, STRIDE_H, PAD_H)

    # Lane-flattened input: (H, N*W) with data at lane offset 1 so the three kw taps
    # become static-offset loads; the two extra lanes are the batch-edge W-padding.
    x_flat = jnp.transpose(x_nchw[:, 0, :, :], (1, 0, 2)).reshape(h, nw)
    x_flat = jnp.pad(x_flat, ((0, 0), (1, 1))).astype(jnp.float32)

    # All 27 weight scalars as one flat 1-D SMEM array (one tiny prologue DMA).
    w_all = jnp.stack([w1, w2, w3]).reshape(27).astype(jnp.float32)

    flops = 2 * KH * KW * nw * (h1 + h2 + h3)
    bytes_accessed = 4 * (h * (nw + 2) + h3 * nw + 27)

    out = pl.pallas_call(
        functools.partial(_fused_convnet_kernel, n=n, w=wd),
        out_shape=jax.ShapeDtypeStruct((h3, nw), jnp.float32),
        in_specs=[
            pl.BlockSpec(memory_space=pltpu.MemorySpace.SMEM),   # weights (27,)
            pl.BlockSpec(memory_space=pltpu.MemorySpace.VMEM),   # x (H, N*W+2)
        ],
        out_specs=pl.BlockSpec(memory_space=pltpu.MemorySpace.VMEM),
        scratch_shapes=[
            # One reused (never zero-filled) activation scratch for layers 1 & 2.
            pltpu.VMEM((max(h1, h2, 1), nw + 2), jnp.float32),
        ],
        cost_estimate=pl.CostEstimate(
            flops=flops, transcendentals=0, bytes_accessed=bytes_accessed),
    )(w_all, x_flat)

    # (OH3, N*W) -> (N, 1, OH3, W)
    return out.reshape(h3, n, wd).transpose(1, 0, 2)[:, None, :, :]


def _reference_forward(x_nchw, w1, w2, w3):
    """Pure-JAX reference using lax.conv, matching PyTorch Conv2d semantics."""
    def conv(x, w):
        y = lax.conv_general_dilated(
            x, w[None, None, :, :], window_strides=(STRIDE_H, STRIDE_W),
            padding=((PAD_H, PAD_H), (PAD_W, PAD_W)),
            dimension_numbers=("NCHW", "OIHW", "NCHW"))
        return jnp.maximum(y, 0.0)
    return conv(conv(conv(x_nchw, w1), w2), w3)


if __name__ == "__main__":
    key = jax.random.PRNGKey(0)
    kx, k1, k2, k3 = jax.random.split(key, 4)

    # Input: NCHW, batch=2, channels=1 (module requires 1), spatial 16x16.
    x = jax.random.normal(kx, (2, 1, 16, 16), dtype=jnp.float32)

    # Deterministic conv weights, shape (3, 3) each (in=out=1 channel, no bias).
    bound = 1.0 / 3.0  # ~ kaiming-uniform bound for fan_in = 1*3*3
    w1 = jax.random.uniform(k1, (3, 3), jnp.float32, -bound, bound)
    w2 = jax.random.uniform(k2, (3, 3), jnp.float32, -bound, bound)
    w3 = jax.random.uniform(k3, (3, 3), jnp.float32, -bound, bound)

    out = jax.block_until_ready(convnet_forward(x, w1, w2, w3))
    ref = jax.block_until_ready(_reference_forward(x, w1, w2, w3))

    assert out.shape == ref.shape, (out.shape, ref.shape)
    assert jnp.allclose(out, ref, atol=1e-5, rtol=1e-5), \
        float(jnp.max(jnp.abs(out - ref)))

    print("KERNEL_OK")
</pallas_src>

<mosaic_0001>
module attributes {stable_mosaic.version = 11 : i64} {
  func.func @_fused_convnet_kernel(%arg0: memref<27xf32, #tpu.memory_space<smem>>, %arg1: memref<16x34xf32, #tpu.memory_space<vmem>>, %arg2: memref<1x32xf32, #tpu.memory_space<vmem>>, %arg3: memref<2x34xf32, #tpu.memory_space<vmem>>) attributes {dimension_semantics = [], scalar_prefetch = 0 : i64, scratch_operands = 1 : i64, tpu.core_type = #tpu.core_type<tc>} {
    %0 = tpu.iota {dimensions = array<i32: 1>} : vector<1x32xi32>
    %c16_i32 = arith.constant 16 : i32
    %c0_i32 = arith.constant 0 : i32
    %1 = arith.cmpi eq, %c16_i32, %c0_i32 : i32
    %c1_i32 = arith.constant 1 : i32
    %2 = arith.select %1, %c1_i32, %c16_i32 : i32
    %3 = vector.broadcast %2 : i32 to vector<1x32xi32>
    %4 = arith.remsi %0, %3 : vector<1x32xi32>
    %c0_i32_0 = arith.constant 0 : i32
    %5 = vector.broadcast %c0_i32_0 : i32 to vector<1x32xi32>
    %6 = arith.cmpi ne, %4, %5 : vector<1x32xi32>
    %c0_i32_1 = arith.constant 0 : i32
    %7 = vector.broadcast %c0_i32_1 : i32 to vector<1x32xi32>
    %8 = arith.cmpi slt, %4, %7 : vector<1x32xi32>
    %c0_i32_2 = arith.constant 0 : i32
    %9 = arith.cmpi slt, %2, %c0_i32_2 : i32
    %10 = vector.broadcast %9 : i1 to vector<1x32xi1>
    %11 = vector.broadcast %10 : vector<1x32xi1> to vector<1x32xi1>
    %12 = arith.xori %8, %11 : vector<1x32xi1>
    %13 = arith.andi %12, %6 : vector<1x32xi1>
    %14 = vector.broadcast %2 : i32 to vector<1x32xi32>
    %15 = arith.addi %4, %14 : vector<1x32xi32>
    %16 = arith.select %13, %15, %4 : vector<1x32xi1>, vector<1x32xi32>
    %c0_i32_3 = arith.constant 0 : i32
    %17 = vector.broadcast %c0_i32_3 : i32 to vector<1x32xi32>
    %18 = arith.cmpi ne, %16, %17 : vector<1x32xi32>
    %c15_i32 = arith.constant 15 : i32
    %19 = vector.broadcast %c15_i32 : i32 to vector<1x32xi32>
    %20 = arith.cmpi ne, %16, %19 : vector<1x32xi32>
    %cst = arith.constant 0.000000e+00 : f32
    %21 = vector.broadcast %cst : f32 to vector<1x32xf32>
    %c0 = arith.constant 0 : index
    %c0_4 = arith.constant 0 : index
    %22 = vector.load %arg1[%c0, %c0_4] : memref<16x34xf32, #tpu.memory_space<vmem>>, vector<1x32xf32>
    %cst_5 = arith.constant 0.000000e+00 : f32
    %23 = vector.broadcast %cst_5 : f32 to vector<1x32xf32>
    %24 = arith.select %18, %22, %23 : vector<1x32xi1>, vector<1x32xf32>
    %c3 = arith.constant 3 : index
    %25 = memref.load %arg0[%c3] : memref<27xf32, #tpu.memory_space<smem>>
    %26 = vector.broadcast %25 : f32 to vector<1x32xf32>
    %27 = arith.mulf %26, %24 : vector<1x32xf32>
    %28 = arith.addf %21, %27 : vector<1x32xf32>
    %c0_6 = arith.constant 0 : index
    %c1 = arith.constant 1 : index
    %29 = vector.load %arg1[%c0_6, %c1] : memref<16x34xf32, #tpu.memory_space<vmem>>, vector<1x32xf32>
    %c4 = arith.constant 4 : index
    %30 = memref.load %arg0[%c4] : memref<27xf32, #tpu.memory_space<smem>>
    %31 = vector.broadcast %30 : f32 to vector<1x32xf32>
    %32 = arith.mulf %31, %29 : vector<1x32xf32>
    %33 = arith.addf %28, %32 : vector<1x32xf32>
    %c0_7 = arith.constant 0 : index
    %c2 = arith.constant 2 : index
    %34 = vector.load %arg1[%c0_7, %c2] : memref<16x34xf32, #tpu.memory_space<vmem>>, vector<1x32xf32>
    %cst_8 = arith.constant 0.000000e+00 : f32
    %35 = vector.broadcast %cst_8 : f32 to vector<1x32xf32>
    %36 = arith.select %20, %34, %35 : vector<1x32xi1>, vector<1x32xf32>
    %c5 = arith.constant 5 : index
    %37 = memref.load %arg0[%c5] : memref<27xf32, #tpu.memory_space<smem>>
    %38 = vector.broadcast %37 : f32 to vector<1x32xf32>
    %39 = arith.mulf %38, %36 : vector<1x32xf32>
    %40 = arith.addf %33, %39 : vector<1x32xf32>
    %c1_9 = arith.constant 1 : index
    %c0_10 = arith.constant 0 : index
    %41 = vector.load %arg1[%c1_9, %c0_10] : memref<16x34xf32, #tpu.memory_space<vmem>>, vector<1x32xf32>
    %cst_11 = arith.constant 0.000000e+00 : f32
    %42 = vector.broadcast %cst_11 : f32 to vector<1x32xf32>
    %43 = arith.select %18, %41, %42 : vector<1x32xi1>, vector<1x32xf32>
    %c6 = arith.constant 6 : index
    %44 = memref.load %arg0[%c6] : memref<27xf32, #tpu.memory_space<smem>>
    %45 = vector.broadcast %44 : f32 to vector<1x32xf32>
    %46 = arith.mulf %45, %43 : vector<1x32xf32>
    %47 = arith.addf %40, %46 : vector<1x32xf32>
    %c1_12 = arith.constant 1 : index
    %c1_13 = arith.constant 1 : index
    %48 = vector.load %arg1[%c1_12, %c1_13] : memref<16x34xf32, #tpu.memory_space<vmem>>, vector<1x32xf32>
    %c7 = arith.constant 7 : index
    %49 = memref.load %arg0[%c7] : memref<27xf32, #tpu.memory_space<smem>>
    %50 = vector.broadcast %49 : f32 to vector<1x32xf32>
    %51 = arith.mulf %50, %48 : vector<1x32xf32>
    %52 = arith.addf %47, %51 : vector<1x32xf32>
    %c1_14 = arith.constant 1 : index
    %c2_15 = arith.constant 2 : index
    %53 = vector.load %arg1[%c1_14, %c2_15] : memref<16x34xf32, #tpu.memory_space<vmem>>, vector<1x32xf32>
    %cst_16 = arith.constant 0.000000e+00 : f32
    %54 = vector.broadcast %cst_16 : f32 to vector<1x32xf32>
    %55 = arith.select %20, %53, %54 : vector<1x32xi1>, vector<1x32xf32>
    %c8 = arith.constant 8 : index
    %56 = memref.load %arg0[%c8] : memref<27xf32, #tpu.memory_space<smem>>
    %57 = vector.broadcast %56 : f32 to vector<1x32xf32>
    %58 = arith.mulf %57, %55 : vector<1x32xf32>
    %59 = arith.addf %52, %58 : vector<1x32xf32>
    %cst_17 = arith.constant 0.000000e+00 : f32
    %60 = vector.broadcast %cst_17 : f32 to vector<1x32xf32>
    %61 = arith.maximumf %59, %60 : vector<1x32xf32>
    %cst_18 = arith.constant 0.000000e+00 : f32
    %62 = vector.broadcast %cst_18 : f32 to vector<1x32xf32>
    %c9 = arith.constant 9 : index
    %c0_19 = arith.constant 0 : index
    %63 = vector.load %arg1[%c9, %c0_19] : memref<16x34xf32, #tpu.memory_space<vmem>>, vector<1x32xf32>
    %cst_20 = arith.constant 0.000000e+00 : f32
    %64 = vector.broadcast %cst_20 : f32 to vector<1x32xf32>
    %65 = arith.select %18, %63, %64 : vector<1x32xi1>, vector<1x32xf32>
    %c0_21 = arith.constant 0 : index
    %66 = memref.load %arg0[%c0_21] : memref<27xf32, #tpu.memory_space<smem>>
    %67 = vector.broadcast %66 : f32 to vector<1x32xf32>
    %68 = arith.mulf %67, %65 : vector<1x32xf32>
    %69 = arith.addf %62, %68 : vector<1x32xf32>
    %c9_22 = arith.constant 9 : index
    %c1_23 = arith.constant 1 : index
    %70 = vector.load %arg1[%c9_22, %c1_23] : memref<16x34xf32, #tpu.memory_space<vmem>>, vector<1x32xf32>
    %c1_24 = arith.constant 1 : index
    %71 = memref.load %arg0[%c1_24] : memref<27xf32, #tpu.memory_space<smem>>
    %72 = vector.broadcast %71 : f32 to vector<1x32xf32>
    %73 = arith.mulf %72, %70 : vector<1x32xf32>
    %74 = arith.addf %69, %73 : vector<1x32xf32>
    %c9_25 = arith.constant 9 : index
    %c2_26 = arith.constant 2 : index
    %75 = vector.load %arg1[%c9_25, %c2_26] : memref<16x34xf32, #tpu.memory_space<vmem>>, vector<1x32xf32>
    %cst_27 = arith.constant 0.000000e+00 : f32
    %76 = vector.broadcast %cst_27 : f32 to vector<1x32xf32>
    %77 = arith.select %20, %75, %76 : vector<1x32xi1>, vector<1x32xf32>
    %c2_28 = arith.constant 2 : index
    %78 = memref.load %arg0[%c2_28] : memref<27xf32, #tpu.memory_space<smem>>
    %79 = vector.broadcast %78 : f32 to vector<1x32xf32>
    %80 = arith.mulf %79, %77 : vector<1x32xf32>
    %81 = arith.addf %74, %80 : vector<1x32xf32>
    %c10 = arith.constant 10 : index
    %c0_29 = arith.constant 0 : index
    %82 = vector.load %arg1[%c10, %c0_29] : memref<16x34xf32, #tpu.memory_space<vmem>>, vector<1x32xf32>
    %cst_30 = arith.constant 0.000000e+00 : f32
    %83 = vector.broadcast %cst_30 : f32 to vector<1x32xf32>
    %84 = arith.select %18, %82, %83 : vector<1x32xi1>, vector<1x32xf32>
    %85 = arith.mulf %26, %84 : vector<1x32xf32>
    %86 = arith.addf %81, %85 : vector<1x32xf32>
    %c10_31 = arith.constant 10 : index
    %c1_32 = arith.constant 1 : index
    %87 = vector.load %arg1[%c10_31, %c1_32] : memref<16x34xf32, #tpu.memory_space<vmem>>, vector<1x32xf32>
    %88 = arith.mulf %31, %87 : vector<1x32xf32>
    %89 = arith.addf %86, %88 : vector<1x32xf32>
    %c10_33 = arith.constant 10 : index
    %c2_34 = arith.constant 2 : index
    %90 = vector.load %arg1[%c10_33, %c2_34] : memref<16x34xf32, #tpu.memory_space<vmem>>, vector<1x32xf32>
    %cst_35 = arith.constant 0.000000e+00 : f32
    %91 = vector.broadcast %cst_35 : f32 to vector<1x32xf32>
    %92 = arith.select %20, %90, %91 : vector<1x32xi1>, vector<1x32xf32>
    %93 = arith.mulf %38, %92 : vector<1x32xf32>
    %94 = arith.addf %89, %93 : vector<1x32xf32>
    %c11 = arith.constant 11 : index
    %c0_36 = arith.constant 0 : index
    %95 = vector.load %arg1[%c11, %c0_36] : memref<16x34xf32, #tpu.memory_space<vmem>>, vector<1x32xf32>
    %cst_37 = arith.constant 0.000000e+00 : f32
    %96 = vector.broadcast %cst_37 : f32 to vector<1x32xf32>
    %97 = arith.select %18, %95, %96 : vector<1x32xi1>, vector<1x32xf32>
    %98 = arith.mulf %45, %97 : vector<1x32xf32>
    %99 = arith.addf %94, %98 : vector<1x32xf32>
    %c11_38 = arith.constant 11 : index
    %c1_39 = arith.constant 1 : index
    %100 = vector.load %arg1[%c11_38, %c1_39] : memref<16x34xf32, #tpu.memory_space<vmem>>, vector<1x32xf32>
    %101 = arith.mulf %50, %100 : vector<1x32xf32>
    %102 = arith.addf %99, %101 : vector<1x32xf32>
    %c11_40 = arith.constant 11 : index
    %c2_41 = arith.constant 2 : index
    %103 = vector.load %arg1[%c11_40, %c2_41] : memref<16x34xf32, #tpu.memory_space<vmem>>, vector<1x32xf32>
    %cst_42 = arith.constant 0.000000e+00 : f32
    %104 = vector.broadcast %cst_42 : f32 to vector<1x32xf32>
    %105 = arith.select %20, %103, %104 : vector<1x32xi1>, vector<1x32xf32>
    %106 = arith.mulf %57, %105 : vector<1x32xf32>
    %107 = arith.addf %102, %106 : vector<1x32xf32>
    %cst_43 = arith.constant 0.000000e+00 : f32
    %108 = vector.broadcast %cst_43 : f32 to vector<1x32xf32>
    %109 = arith.maximumf %107, %108 : vector<1x32xf32>
    %c0_44 = arith.constant 0 : index
    %c1_45 = arith.constant 1 : index
    %110 = vector.load %arg3[%c0_44, %c1_45] : memref<2x34xf32, #tpu.memory_space<vmem>>, vector<1x32xf32>
    tpu.vector_store %arg3[%c0_44, %c1_45], %61 {strides = array<i32>} : memref<2x34xf32, #tpu.memory_space<vmem>>, vector<1x32xf32>,
    %c1_46 = arith.constant 1 : index
    %c1_47 = arith.constant 1 : index
    %111 = vector.load %arg3[%c1_46, %c1_47] : memref<2x34xf32, #tpu.memory_space<vmem>>, vector<1x32xf32>
    tpu.vector_store %arg3[%c1_46, %c1_47], %109 {strides = array<i32>} : memref<2x34xf32, #tpu.memory_space<vmem>>, vector<1x32xf32>,
    %cst_48 = arith.constant 0.000000e+00 : f32
    %112 = vector.broadcast %cst_48 : f32 to vector<1x32xf32>
    %c0_49 = arith.constant 0 : index
    %c0_50 = arith.constant 0 : index
    %113 = vector.load %arg3[%c0_49, %c0_50] : memref<2x34xf32, #tpu.memory_space<vmem>>, vector<1x32xf32>
    %cst_51 = arith.constant 0.000000e+00 : f32
    %114 = vector.broadcast %cst_51 : f32 to vector<1x32xf32>
    %115 = arith.select %18, %113, %114 : vector<1x32xi1>, vector<1x32xf32>
    %c12 = arith.constant 12 : index
    %116 = memref.load %arg0[%c12] : memref<27xf32, #tpu.memory_space<smem>>
    %117 = vector.broadcast %116 : f32 to vector<1x32xf32>
    %118 = arith.mulf %117, %115 : vector<1x32xf32>
    %119 = arith.addf %112, %118 : vector<1x32xf32>
    %c0_52 = arith.constant 0 : index
    %c1_53 = arith.constant 1 : index
    %120 = vector.load %arg3[%c0_52, %c1_53] : memref<2x34xf32, #tpu.memory_space<vmem>>, vector<1x32xf32>
    %c13 = arith.constant 13 : index
    %121 = memref.load %arg0[%c13] : memref<27xf32, #tpu.memory_space<smem>>
    %122 = vector.broadcast %121 : f32 to vector<1x32xf32>
    %123 = arith.mulf %122, %120 : vector<1x32xf32>
    %124 = arith.addf %119, %123 : vector<1x32xf32>
    %c0_54 = arith.constant 0 : index
    %c2_55 = arith.constant 2 : index
    %125 = vector.load %arg3[%c0_54, %c2_55] : memref<2x34xf32, #tpu.memory_space<vmem>>, vector<1x32xf32>
    %cst_56 = arith.constant 0.000000e+00 : f32
    %126 = vector.broadcast %cst_56 : f32 to vector<1x32xf32>
    %127 = arith.select %20, %125, %126 : vector<1x32xi1>, vector<1x32xf32>
    %c14 = arith.constant 14 : index
    %128 = memref.load %arg0[%c14] : memref<27xf32, #tpu.memory_space<smem>>
    %129 = vector.broadcast %128 : f32 to vector<1x32xf32>
    %130 = arith.mulf %129, %127 : vector<1x32xf32>
    %131 = arith.addf %124, %130 : vector<1x32xf32>
    %c1_57 = arith.constant 1 : index
    %c0_58 = arith.constant 0 : index
    %132 = vector.load %arg3[%c1_57, %c0_58] : memref<2x34xf32, #tpu.memory_space<vmem>>, vector<1x32xf32>
    %cst_59 = arith.constant 0.000000e+00 : f32
    %133 = vector.broadcast %cst_59 : f32 to vector<1x32xf32>
    %134 = arith.select %18, %132, %133 : vector<1x32xi1>, vector<1x32xf32>
    %c15 = arith.constant 15 : index
    %135 = memref.load %arg0[%c15] : memref<27xf32, #tpu.memory_space<smem>>
    %136 = vector.broadcast %135 : f32 to vector<1x32xf32>
    %137 = arith.mulf %136, %134 : vector<1x32xf32>
    %138 = arith.addf %131, %137 : vector<1x32xf32>
    %c1_60 = arith.constant 1 : index
    %c1_61 = arith.constant 1 : index
    %139 = vector.load %arg3[%c1_60, %c1_61] : memref<2x34xf32, #tpu.memory_space<vmem>>, vector<1x32xf32>
    %c16 = arith.constant 16 : index
    %140 = memref.load %arg0[%c16] : memref<27xf32, #tpu.memory_space<smem>>
    %141 = vector.broadcast %140 : f32 to vector<1x32xf32>
    %142 = arith.mulf %141, %139 : vector<1x32xf32>
    %143 = arith.addf %138, %142 : vector<1x32xf32>
    %c1_62 = arith.constant 1 : index
    %c2_63 = arith.constant 2 : index
    %144 = vector.load %arg3[%c1_62, %c2_63] : memref<2x34xf32, #tpu.memory_space<vmem>>, vector<1x32xf32>
    %cst_64 = arith.constant 0.000000e+00 : f32
    %145 = vector.broadcast %cst_64 : f32 to vector<1x32xf32>
    %146 = arith.select %20, %144, %145 : vector<1x32xi1>, vector<1x32xf32>
    %c17 = arith.constant 17 : index
    %147 = memref.load %arg0[%c17] : memref<27xf32, #tpu.memory_space<smem>>
    %148 = vector.broadcast %147 : f32 to vector<1x32xf32>
    %149 = arith.mulf %148, %146 : vector<1x32xf32>
    %150 = arith.addf %143, %149 : vector<1x32xf32>
    %cst_65 = arith.constant 0.000000e+00 : f32
    %151 = vector.broadcast %cst_65 : f32 to vector<1x32xf32>
    %152 = arith.maximumf %150, %151 : vector<1x32xf32>
    %c0_66 = arith.constant 0 : index
    %c1_67 = arith.constant 1 : index
    %153 = vector.load %arg3[%c0_66, %c1_67] : memref<2x34xf32, #tpu.memory_space<vmem>>, vector<1x32xf32>
    tpu.vector_store %arg3[%c0_66, %c1_67], %152 {strides = array<i32>} : memref<2x34xf32, #tpu.memory_space<vmem>>, vector<1x32xf32>,
    %cst_68 = arith.constant 0.000000e+00 : f32
    %154 = vector.broadcast %cst_68 : f32 to vector<1x32xf32>
    %c0_69 = arith.constant 0 : index
    %c0_70 = arith.constant 0 : index
    %155 = vector.load %arg3[%c0_69, %c0_70] : memref<2x34xf32, #tpu.memory_space<vmem>>, vector<1x32xf32>
    %cst_71 = arith.constant 0.000000e+00 : f32
    %156 = vector.broadcast %cst_71 : f32 to vector<1x32xf32>
    %157 = arith.select %18, %155, %156 : vector<1x32xi1>, vector<1x32xf32>
    %c21 = arith.constant 21 : index
    %158 = memref.load %arg0[%c21] : memref<27xf32, #tpu.memory_space<smem>>
    %159 = vector.broadcast %158 : f32 to vector<1x32xf32>
    %160 = arith.mulf %159, %157 : vector<1x32xf32>
    %161 = arith.addf %154, %160 : vector<1x32xf32>
    %c0_72 = arith.constant 0 : index
    %c1_73 = arith.constant 1 : index
    %162 = vector.load %arg3[%c0_72, %c1_73] : memref<2x34xf32, #tpu.memory_space<vmem>>, vector<1x32xf32>
    %c22 = arith.constant 22 : index
    %163 = memref.load %arg0[%c22] : memref<27xf32, #tpu.memory_space<smem>>
    %164 = vector.broadcast %163 : f32 to vector<1x32xf32>
    %165 = arith.mulf %164, %162 : vector<1x32xf32>
    %166 = arith.addf %161, %165 : vector<1x32xf32>
    %c0_74 = arith.constant 0 : index
    %c2_75 = arith.constant 2 : index
    %167 = vector.load %arg3[%c0_74, %c2_75] : memref<2x34xf32, #tpu.memory_space<vmem>>, vector<1x32xf32>
    %cst_76 = arith.constant 0.000000e+00 : f32
    %168 = vector.broadcast %cst_76 : f32 to vector<1x32xf32>
    %169 = arith.select %20, %167, %168 : vector<1x32xi1>, vector<1x32xf32>
    %c23 = arith.constant 23 : index
    %170 = memref.load %arg0[%c23] : memref<27xf32, #tpu.memory_space<smem>>
    %171 = vector.broadcast %170 : f32 to vector<1x32xf32>
    %172 = arith.mulf %171, %169 : vector<1x32xf32>
    %173 = arith.addf %166, %172 : vector<1x32xf32>
    %cst_77 = arith.constant 0.000000e+00 : f32
    %174 = vector.broadcast %cst_77 : f32 to vector<1x32xf32>
    %175 = arith.maximumf %173, %174 : vector<1x32xf32>
    %c0_78 = arith.constant 0 : index
    %c0_79 = arith.constant 0 : index
    %176 = vector.load %arg2[%c0_78, %c0_79] : memref<1x32xf32, #tpu.memory_space<vmem>>, vector<1x32xf32>
    tpu.vector_store %arg2[%c0_78, %c0_79], %175 {strides = array<i32>} : memref<1x32xf32, #tpu.memory_space<vmem>>, vector<1x32xf32>,
    return
  }
}

</mosaic_0001>

<llo_original>
// kernel: tpu_custom_call.1
$region0: #{tpu_custom_call.1}
  #allocation0 [shape = 'u32[]', space=smem, size = 0x4, offset = 0x4, fixed_abs, tag = 'smem constant byte address 0x4 - core index']
  #allocation1 [shape = 'u32[72,128]{1,0:T(1,128)}', space=vmem, size = 0x9000, scoped, tag = 'internal scratch']
  #allocation2 [shape = 'f32[2,34]{1,0:T(2,128)}', space=vmem, size = 0x400, scoped, tag = 'scratch operand']
  %s0 = inlined_call_operand.hbm [shape: f32[27], index: 0, kind: input, shape index: {}]
  %s1 = inlined_call_operand.hbm [shape: f32[16,34], index: 1, kind: input, shape index: {}]
  %s2 = inlined_call_operand.hbm [shape: f32[1,32], index: 2, kind: output, shape index: {}]
  %s3 = sld [smem:[#allocation0]]
  $region26: #{tpu_custom_call.1} parent=0
    _
  %s5 = ssub.s32 1, %s3
  %s6 = scalar_select 0, %s5, %s3
  $region1: #{tpu_custom_call.1} parent=0
    #allocation3 [shape = 'u8[512]{0}', space=smem, size = 0x200, scoped, tag = 'input window, operand 0, single buffered']
    #allocation4 [shape = 's32[1]{0}', space=sflag, size = 0x4, scoped, tag = 'scoped memory for tpu_custom_call.1']
    #allocation5 [shape = 's32[1]{0}', space=sflag, size = 0x4, scoped, tag = 'scoped memory for tpu_custom_call.1']
    #allocation6 [shape = 's32[1]{0}', space=sflag, size = 0x4, scoped, tag = 'scoped memory for tpu_custom_call.1']
    #allocation7 [shape = 'u8[8192]{0}', space=vmem, size = 0x2000, scoped, tag = 'input window, operand 1, single buffered']
    #allocation8 [shape = 'u8[512]{0}', space=vmem, size = 0x400, scoped, tag = 'output window, operand 0, single buffered']
    %7 = vsyncpa [#allocation6], 0
    %8 = vsyncpa [#allocation4], 0
    %9 = vsyncpa [#allocation5], 0
    // Predicated region
    $region2: #{tpu_custom_call.1} parent=1 // pred_check
      _
    $region3: #{tpu_custom_call.1} parent=1 // pred_check_branch
      %11 = sbr.rel (0) target = $region5
    $region4: #{tpu_custom_call.1} parent=1 // pred_region
      %13 = vsyncadd [#allocation6], 0
      %s15 = sshll.u32 %s0, 4
      %s16 = int_to_ptr.hbm [resolvable:$true] %s15
      %18 = dma.hbm_to_smem %s16, 16, [#allocation3], [#allocation6]
    $region5: #{tpu_custom_call.1} parent=1 // pred_fallthru
      _
    // Predicated region
    $region6: #{tpu_custom_call.1} parent=1 // pred_check
      _
    $region7: #{tpu_custom_call.1} parent=1 // pred_check_branch
      %20 = sbr.rel (0) target = $region9
    $region8: #{tpu_custom_call.1} parent=1 // pred_region
      %22 = vsyncadd [#allocation4], 0
      %s23 = sshll.u32 %s1, 4
      %s24 = int_to_ptr.hbm [resolvable:$true] %s23
      %s25 = sshll.u32 [#allocation7], 4
      %s26 = int_to_ptr.vmem [resolvable:$true] %s25
      %31 = dma.hbm_to_vmem [thread:$0]  %s24, 256, %s26, [#allocation4], 128, 128, 8
    $region9: #{tpu_custom_call.1} parent=1 // pred_fallthru
      _
    // Predicated region
    $region10: #{tpu_custom_call.1} parent=1 // pred_check
      _
    $region11: #{tpu_custom_call.1} parent=1 // pred_check_branch
      %33 = sbr.rel (0) target = $region13
    $region12: #{tpu_custom_call.1} parent=1 // pred_region
      %35 = dma.done [#allocation6], 16
    $region13: #{tpu_custom_call.1} parent=1 // pred_fallthru
      _
    // Predicated region
    $region14: #{tpu_custom_call.1} parent=1 // pred_check
      _
    $region15: #{tpu_custom_call.1} parent=1 // pred_check_branch
      %37 = sbr.rel (0) target = $region17
    $region16: #{tpu_custom_call.1} parent=1 // pred_region
      %39 = dma.done [#allocation4], 256
    $region17: #{tpu_custom_call.1} parent=1 // pred_fallthru
      _
    %40 = sfence
    %v41 = vlaneseq
    %v42 = vand.u32 %v41, 127
    %vm43 = vcmp.lt.s32.totalorder %v42, 0
    %v44 = vsub.s32 0, %v42
    %v45 = vsel %vm43, %v44, %v42
    %v46 = vshrl.u32 %v45, 4
    %v47 = vand.u32 %v45, 15
    %v48 = vsub.s32 0, %v47
    %v49 = vsel %vm43, %v48, %v47
    %vm50 = vcmp.ne.s32.totalorder %v49, 0
    %vm51 = vcmp.lt.s32.totalorder %v49, 0
    %vm52 = vmand %vm51, %vm50
    %v53 = vadd.s32 %v49, 16
    %v54 = vsel %vm52, %v53, %v49
    %vm55 = vcmp.ne.s32.totalorder %v54, 0
    %vm56 = vcmp.ne.s32.totalorder %v54, 15
    %v57 = vld [vmem:[#allocation7] sm:$0x1]
    %v58 = vsel %vm55, %v57, 0.0
    %s59 = sld [smem:[#allocation3 + $0x3]]
    %v60 = vstv %s59
    %v61 = vmul.f32 %v60, %v58
    %v62 = vadd.f32 %v61, 0.0
    %s63 = sld [smem:[#allocation3 + $0x4]]
    %v64 = vstv %s63
    %v65 = vmul.f32 %v64, %v57
    %67 = vrot.lane.b32.xlu0 %v65, 127
    %v68 = vpop.permute.xlu0 %67
    %v70 = vadd.f32 %v62, %v68
    %72 = vrot.lane.b32.xlu0 %v57, 126
    %v73 = vpop.permute.xlu0 %72
    %v75 = vsel %vm56, %v73, 0.0
    %s76 = sld [smem:[#allocation3 + $0x5]]
    %v77 = vstv %s76
    %v78 = vmul.f32 %v77, %v75
    %v79 = vadd.f32 %v70, %v78
    %v80 = vld [vmem:[#allocation7 + $0x1] sm:$0x1]
    %v81 = vsel %vm55, %v80, 0.0
    %s82 = sld [smem:[#allocation3 + $0x6]]
    %v83 = vstv %s82
    %v84 = vmul.f32 %v83, %v81
    %v85 = vadd.f32 %v79, %v84
    %s86 = sld [smem:[#allocation3 + $0x7]]
    %v87 = vstv %s86
    %v88 = vmul.f32 %v87, %v80
    %90 = vrot.lane.b32.xlu0 %v88, 127
    %v91 = vpop.permute.xlu0 %90
    %v93 = vadd.f32 %v85, %v91
    %95 = vrot.lane.b32.xlu0 %v80, 126
    %v96 = vpop.permute.xlu0 %95
    %v98 = vsel %vm56, %v96, 0.0
    %s99 = sld [smem:[#allocation3 + $0x8]]
    %v100 = vstv %s99
    %v101 = vmul.f32 %v100, %v98
    %v102 = vadd.f32 %v93, %v101
    %v103 = vmax.f32 %v102, 0.0
    %v104 = vld [vmem:[#allocation7 + $0x9] sm:$0x1]
    %v105 = vsel %vm55, %v104, 0.0
    %s106 = sld [smem:[#allocation3]]
    %v107 = vstv %s106
    %v108 = vmul.f32 %v107, %v105
    %v109 = vadd.f32 %v108, 0.0
    %s110 = sld [smem:[#allocation3 + $0x1]]
    %v111 = vstv %s110
    %v112 = vmul.f32 %v111, %v104
    %114 = vrot.lane.b32.xlu0 %v112, 127
    %v115 = vpop.permute.xlu0 %114
    %v117 = vadd.f32 %v109, %v115
    %119 = vrot.lane.b32.xlu0 %v104, 126
    %v120 = vpop.permute.xlu0 %119
    %v122 = vsel %vm56, %v120, 0.0
    %s123 = sld [smem:[#allocation3 + $0x2]]
    %v124 = vstv %s123
    %v125 = vmul.f32 %v124, %v122
    %v126 = vadd.f32 %v117, %v125
    %v127 = vld [vmem:[#allocation7 + $0xa] sm:$0x1]
    %v128 = vsel %vm55, %v127, 0.0
    %v129 = vmul.f32 %v60, %v128
    %v130 = vadd.f32 %v126, %v129
    %v131 = vmul.f32 %v64, %v127
    %133 = vrot.lane.b32.xlu0 %v131, 127
    %v134 = vpop.permute.xlu0 %133
    %v136 = vadd.f32 %v130, %v134
    %138 = vrot.lane.b32.xlu0 %v127, 126
    %v139 = vpop.permute.xlu0 %138
    %v141 = vsel %vm56, %v139, 0.0
    %v142 = vmul.f32 %v77, %v141
    %v143 = vadd.f32 %v136, %v142
    %v144 = vld [vmem:[#allocation7 + $0xb] sm:$0x1]
    %v145 = vsel %vm55, %v144, 0.0
    %v146 = vmul.f32 %v83, %v145
    %v147 = vadd.f32 %v143, %v146
    %v148 = vmul.f32 %v87, %v144
    %150 = vrot.lane.b32.xlu0 %v148, 127
    %v151 = vpop.permute.xlu0 %150
    %v153 = vadd.f32 %v147, %v151
    %155 = vrot.lane.b32.xlu0 %v144, 126
    %v156 = vpop.permute.xlu0 %155
    %v158 = vsel %vm56, %v156, 0.0
    %v159 = vmul.f32 %v100, %v158
    %v160 = vadd.f32 %v153, %v159
    %v161 = vmax.f32 %v160, 0.0
    %163 = vrot.lane.b32.xlu0 %v103, 1
    %v164 = vpop.permute.xlu0 %163
    %vm166 = vcmask 262152
    %167 = vst.msk [vmem:[#allocation2] sm:$0x1] %vm166, %v164
    %169 = vrot.lane.b32.xlu0 %v161, 1
    %v170 = vpop.permute.xlu0 %169
    %172 = vst.msk [vmem:[#allocation2 + $0x1] sm:$0x1] %vm166, %v170
    %v173 = vld [vmem:[#allocation2] sm:$0x1]
    %v174 = vsel %vm55, %v173, 0.0
    %s175 = sld [smem:[#allocation3 + $0xc]]
    %v176 = vstv %s175
    %v177 = vmul.f32 %v176, %v174
    %v178 = vadd.f32 %v177, 0.0
    %s179 = sld [smem:[#allocation3 + $0xd]]
    %v180 = vstv %s179
    %v181 = vmul.f32 %v180, %v173
    %183 = vrot.lane.b32.xlu0 %v181, 127
    %v184 = vpop.permute.xlu0 %183
    %v186 = vadd.f32 %v178, %v184
    %188 = vrot.lane.b32.xlu0 %v173, 126
    %v189 = vpop.permute.xlu0 %188
    %v191 = vsel %vm56, %v189, 0.0
    %s192 = sld [smem:[#allocation3 + $0xe]]
    %v193 = vstv %s192
    %v194 = vmul.f32 %v193, %v191
    %v195 = vadd.f32 %v186, %v194
    %v196 = vld [vmem:[#allocation2 + $0x1] sm:$0x1]
    %v197 = vsel %vm55, %v196, 0.0
    %s198 = sld [smem:[#allocation3 + $0xf]]
    %v199 = vstv %s198
    %v200 = vmul.f32 %v199, %v197
    %v201 = vadd.f32 %v195, %v200
    %s202 = sld [smem:[#allocation3 + $0x10]]
    %v203 = vstv %s202
    %v204 = vmul.f32 %v203, %v196
    %206 = vrot.lane.b32.xlu0 %v204, 127
    %v207 = vpop.permute.xlu0 %206
    %v209 = vadd.f32 %v201, %v207
    %211 = vrot.lane.b32.xlu0 %v196, 126
    %v212 = vpop.permute.xlu0 %211
    %v214 = vsel %vm56, %v212, 0.0
    %s215 = sld [smem:[#allocation3 + $0x11]]
    %v216 = vstv %s215
    %v217 = vmul.f32 %v216, %v214
    %v218 = vadd.f32 %v209, %v217
    %v219 = vmax.f32 %v218, 0.0
    %221 = vrot.lane.b32.xlu0 %v219, 1
    %v222 = vpop.permute.xlu0 %221
    %224 = vst.msk [vmem:[#allocation2] sm:$0x1] %vm166, %v222
    %v225 = vld [vmem:[#allocation2] sm:$0x1]
    %v226 = vsel %vm55, %v225, 0.0
    %s227 = sld [smem:[#allocation3 + $0x15]]
    %v228 = vstv %s227
    %v229 = vmul.f32 %v228, %v226
    %v230 = vadd.f32 %v229, 0.0
    %s231 = sld [smem:[#allocation3 + $0x16]]
    %v232 = vstv %s231
    %v233 = vmul.f32 %v232, %v225
    %235 = vrot.lane.b32.xlu0 %v233, 127
    %v236 = vpop.permute.xlu0 %235
    %v238 = vadd.f32 %v230, %v236
    %240 = vrot.lane.b32.xlu0 %v225, 126
    %v241 = vpop.permute.xlu0 %240
    %v243 = vsel %vm56, %v241, 0.0
    %s244 = sld [smem:[#allocation3 + $0x17]]
    %v245 = vstv %s244
    %v246 = vmul.f32 %v245, %v243
    %v247 = vadd.f32 %v238, %v246
    %v248 = vmax.f32 %v247, 0.0
    %vm249 = vcmask 253952
    %250 = vst.msk [vmem:[#allocation8] sm:$0x1] %vm249, %v248
    // Predicated region
    $region18: #{tpu_custom_call.1} parent=1 // pred_check
      _
    $region19: #{tpu_custom_call.1} parent=1 // pred_check_branch
      %252 = sbr.rel (0) target = $region21
    $region20: #{tpu_custom_call.1} parent=1 // pred_region
      %254 = vsyncadd [#allocation5], 0
      %s256 = sshll.u32 [#allocation8], 4
      %s257 = int_to_ptr.vmem [resolvable:$true] %s256
      %s258 = sshll.u32 %s2, 4
      %s259 = int_to_ptr.hbm [resolvable:$true] %s258
      %261 = dma.vmem_to_hbm [thread:$0]  %s257, 16, %s259, [#allocation5]
    $region21: #{tpu_custom_call.1} parent=1 // pred_fallthru
      _
    // Predicated region
    $region22: #{tpu_custom_call.1} parent=1 // pred_check
      _
    $region23: #{tpu_custom_call.1} parent=1 // pred_check_branch
      %263 = sbr.rel (0) target = $region25
    $region24: #{tpu_custom_call.1} parent=1 // pred_region
      %265 = dma.done [#allocation5], 16
    $region25: #{tpu_custom_call.1} parent=1 // pred_fallthru
      _
    %266 = vsyncpa [#allocation4], 1
    %267 = vsyncpa [#allocation5], 1
    %268 = vsyncpa [#allocation6], 1

</llo_original>
